<compile_context>
chip_gen: v5e
topology: v5e:2x2
jax: 0.10.0
libtpu: 0.0.40
codegen_flags: <defaults>
</compile_context>

<pallas_src>
import functools

import jax
import jax.numpy as jnp
from jax.experimental import pallas as pl
from jax.experimental.pallas import tpu as pltpu


def _round_up(x, m):
    return ((x + m - 1) // m) * m


def _pcd_kernel(p_ref, pst_ref, prob_ref, o2s_out_ref, s2o_out_ref,
                o2s_min_ref, o2s_prob_ref, *, ps_resident, exact_tie_break):
    """Grid point (i, j): P row-tile i vs Ps column-tile j.

    p_ref    : (TN, 8)           f32  -- augmented P tile
    pst_ref  : (8, TM) / (nj,8,TM) f32 -- augmented Ps (tiled / VMEM-resident)
    prob_ref : (1, TM) / (nj,1,TM) f32 -- probabilities (0 for padding)
    o2s_out  : (TN, 1)           f32  -- per-row weighted min distance
    s2o_out  : (1, 1, TM)        f32  -- per-(i,j) column min of d^2
    o2s_min  : (TN, 1)  VMEM          -- running row min d^2 across j
    o2s_prob : (TN, 1)  VMEM          -- prob at the running row min
    """
    j = pl.program_id(1)
    nj = pl.num_programs(1)

    p_aug = p_ref[...]                             # (TN, 8)
    if ps_resident:
        pst = pst_ref[j]                           # (8, TM)
        prob = prob_ref[j]                         # (1, TM)
    else:
        pst = pst_ref[...]
        prob = prob_ref[...]
    tm = pst.shape[1]

    # Whole squared-distance matrix from a single K=8 MXU matmul.
    d2 = jnp.dot(p_aug, pst,
                 preferred_element_type=jnp.float32,
                 precision=jax.lax.Precision.HIGHEST)   # (TN, TM)

    # ---- o2s: per-P-row running min over Ps tiles (d^2 domain) ------------
    @pl.when(j == 0)
    def _init():
        o2s_min_ref[...] = jnp.full_like(o2s_min_ref, 1e30)
        o2s_prob_ref[...] = jnp.zeros_like(o2s_prob_ref)

    blk_min = jnp.min(d2, axis=1, keepdims=True)        # (TN, 1)
    if exact_tie_break:
        # torch first-argmin tie-breaking (lane ids as a (1,TM) iota).
        lane_ids = jax.lax.broadcasted_iota(jnp.int32, (1, tm), 1)
        blk_arg = jnp.min(jnp.where(d2 == blk_min, lane_ids, tm),
                          axis=1, keepdims=True)         # (TN, 1)
        blk_prob = jnp.sum(jnp.where(lane_ids == blk_arg, prob, 0.0),
                           axis=1, keepdims=True)
    else:
        # prob at the minimum (sums probs on exact ties -- measure zero for
        # continuous coordinates).
        blk_prob = jnp.sum(jnp.where(d2 == blk_min, prob, 0.0),
                           axis=1, keepdims=True)        # (TN, 1)

    better = blk_min < o2s_min_ref[...]                  # strict: first j wins
    o2s_prob_ref[...] = jnp.where(better, blk_prob, o2s_prob_ref[...])
    o2s_min_ref[...] = jnp.where(better, blk_min, o2s_min_ref[...])

    @pl.when(j == nj - 1)
    def _finalize():
        d = jnp.sqrt(jnp.maximum(o2s_min_ref[...], 0.0))
        o2s_out_ref[...] = d * o2s_prob_ref[...]          # pad rows sliced off
                                                          # in the wrapper

    # ---- s2o: per-Ps-column min over this P row-tile ----------------------
    s2o_out_ref[0] = jnp.min(d2, axis=0, keepdims=True)   # (1, TM)


def probabilistic_chamfer_distance_loss(P, Ps, probabilities, *,
                                        tn=256, tm=2048,
                                        exact_tie_break=False,
                                        ps_resident_bytes=16 << 20):
    """JAX/Pallas equivalent of ProbabilisticChamferDistanceLoss.forward."""
    n, dp = P.shape
    m, ds_ = Ps.shape
    assert dp == 3 and ds_ == 3, "point clouds must be (N, 3) / (M, 3)"
    if n == 0 or m == 0:
        return jnp.float32(0.0)

    TN = min(tn, _round_up(n, 8))          # multiple of 8 (sublanes)
    TM = min(tm, _round_up(m, 128))        # multiple of 128 (lanes)
    n_pad = _round_up(n, TN)
    m_pad = _round_up(m, TM)
    ni = n_pad // TN
    nj = m_pad // TM

    P32 = P.astype(jnp.float32)
    Ps32 = Ps.astype(jnp.float32)
    prob32 = probabilities.astype(jnp.float32)

    # Sentinel coordinate for padded rows/cols, derived from the data range so
    # pad-vs-real squared distances strictly dominate all real ones.
    max_abs = jnp.maximum(jnp.max(jnp.abs(P32)), jnp.max(jnp.abs(Ps32)))
    sentinel = 4.0 * max_abs + 1.0

    p_xyz = jnp.full((n_pad, 3), sentinel, jnp.float32).at[:n].set(P32)
    ps_xyz = jnp.full((m_pad, 3), sentinel, jnp.float32).at[:m].set(Ps32)

    # Augmented operands: d2 = |p|^2 + |ps|^2 - 2 p.ps from one K=8 matmul.
    p_aug = jnp.zeros((n_pad, 8), jnp.float32)
    p_aug = p_aug.at[:, :3].set(-2.0 * p_xyz)
    p_aug = p_aug.at[:, 3].set(jnp.sum(p_xyz * p_xyz, axis=1))
    p_aug = p_aug.at[:, 4].set(1.0)

    pst_aug = jnp.zeros((8, m_pad), jnp.float32)
    pst_aug = pst_aug.at[:3, :].set(ps_xyz.T)
    pst_aug = pst_aug.at[3, :].set(1.0)
    pst_aug = pst_aug.at[4, :].set(jnp.sum(ps_xyz * ps_xyz, axis=1))

    prob_pad = jnp.zeros((1, m_pad), jnp.float32).at[0, :m].set(prob32)

    # Keep the whole (augmented) Ps + prob resident in VMEM when small enough;
    # otherwise fall back to per-j tiled DMAs.
    ps_resident = (m_pad * 36) <= ps_resident_bytes
    if ps_resident:
        pst_in = pst_aug.reshape(8, nj, TM).transpose(1, 0, 2)      # (nj,8,TM)
        prob_in = prob_pad.reshape(1, nj, TM).transpose(1, 0, 2)    # (nj,1,TM)
        pst_spec = pl.BlockSpec((nj, 8, TM), lambda i, j: (0, 0, 0))
        prob_spec = pl.BlockSpec((nj, 1, TM), lambda i, j: (0, 0, 0))
    else:
        pst_in = pst_aug
        prob_in = prob_pad
        pst_spec = pl.BlockSpec((8, TM), lambda i, j: (0, j))
        prob_spec = pl.BlockSpec((1, TM), lambda i, j: (0, j))

    # VMEM budget: a few (TN,TM) temporaries + resident/tiled Ps + small tiles.
    vmem_est = (4 * TN * TM * 4
                + (72 * m_pad if ps_resident else 72 * TM)
                + 4 * TN * 8 * 4 + 4 * TM * 4 + 8 * TN * 4
                + (4 << 20))
    vmem_limit = int(min(max(vmem_est, 32 << 20), 64 << 20))  # v7x-safe cap

    kernel = functools.partial(_pcd_kernel,
                               ps_resident=ps_resident,
                               exact_tie_break=exact_tie_break)

    grid_spec = pltpu.PrefetchScalarGridSpec(
        num_scalar_prefetch=0,
        grid=(ni, nj),
        in_specs=[
            pl.BlockSpec((TN, 8), lambda i, j: (i, 0)),
            pst_spec,
            prob_spec,
        ],
        out_specs=[
            pl.BlockSpec((TN, 1), lambda i, j: (i, 0)),       # o2s per row
            pl.BlockSpec((1, 1, TM), lambda i, j: (i, 0, j)),  # s2o partials
        ],
        scratch_shapes=[
            pltpu.VMEM((TN, 1), jnp.float32),   # o2s running min (d^2)
            pltpu.VMEM((TN, 1), jnp.float32),   # prob at running min
        ],
    )

    o2s_rows, s2o_part = pl.pallas_call(
        kernel,
        out_shape=(jax.ShapeDtypeStruct((n_pad, 1), jnp.float32),
                   jax.ShapeDtypeStruct((ni, 1, m_pad), jnp.float32)),
        grid_spec=grid_spec,
        compiler_params=pltpu.CompilerParams(
            dimension_semantics=("parallel", "arbitrary"),
            vmem_limit_bytes=vmem_limit),
    )(p_aug, pst_in, prob_in)

    # Tiny wrapper-side combine (lets the N grid axis stay "parallel").
    loss_o2s = jnp.sum(o2s_rows[:n, 0])
    s2o_min = jnp.min(s2o_part[:, 0, :], axis=0)                  # (m_pad,)
    loss_s2o = jnp.sum(jnp.sqrt(jnp.maximum(s2o_min, 0.0)) * prob_pad[0])
    return loss_o2s + loss_s2o


def _reference_loss(P, Ps, prob):
    """Pure-JAX reference mirroring the PyTorch module exactly."""
    d_so = jnp.sqrt(jnp.sum((Ps[:, None, :] - P[None, :, :]) ** 2, axis=-1))
    dist_s_to_o = d_so.min(axis=1)                        # (M,)
    d_os = jnp.sqrt(jnp.sum((P[:, None, :] - Ps[None, :, :]) ** 2, axis=-1))
    dist_o_to_s = d_os.min(axis=1)                        # (N,)
    min_idx = jnp.argmin(d_os, axis=1)                    # (N,)
    return (dist_s_to_o * prob).sum() + (dist_o_to_s * prob[min_idx]).sum()


if __name__ == "__main__":
    key = jax.random.PRNGKey(0)
    k1, k2, k3, k4, k5, k6 = jax.random.split(key, 6)

    # Small case (single tile, padded M).
    N, M = 16, 8
    P = jax.random.normal(k1, (N, 3), dtype=jnp.float32)
    Ps = jax.random.normal(k2, (M, 3), dtype=jnp.float32)
    probabilities = jax.nn.softmax(
        jax.random.normal(k3, (M,), dtype=jnp.float32))

    loss = probabilistic_chamfer_distance_loss(P, Ps, probabilities)
    loss = jax.block_until_ready(loss)
    ref = _reference_loss(P, Ps, probabilities)
    assert jnp.allclose(loss, ref, rtol=1e-4, atol=1e-4), (loss, ref)

    # Multi-tile case (2 row tiles, 2 column tiles, padded N and M).
    N2, M2 = 300, 200
    P2 = jax.random.normal(k4, (N2, 3), dtype=jnp.float32)
    Ps2 = jax.random.normal(k5, (M2, 3), dtype=jnp.float32)
    prob2 = jax.nn.softmax(jax.random.normal(k6, (M2,), dtype=jnp.float32))

    loss2 = probabilistic_chamfer_distance_loss(P2, Ps2, prob2, tn=256, tm=128)
    loss2 = jax.block_until_ready(loss2)
    ref2 = _reference_loss(P2, Ps2, prob2)
    assert jnp.allclose(loss2, ref2, rtol=1e-4, atol=1e-4), (loss2, ref2)

    print("KERNEL_OK")
</pallas_src>

<mosaic_0001>
module attributes {stable_mosaic.version = 11 : i64} {
  func.func @_pcd_kernel(%arg0: i32, %arg1: i32, %arg2: memref<16x8xf32, #tpu.memory_space<vmem>>, %arg3: memref<1x8x128xf32, #tpu.memory_space<vmem>>, %arg4: memref<1x1x128xf32, #tpu.memory_space<vmem>>, %arg5: memref<16x1xf32, #tpu.memory_space<vmem>>, %arg6: memref<1x1x128xf32, #tpu.memory_space<vmem>>, %arg7: memref<16x1xf32, #tpu.memory_space<vmem>>, %arg8: memref<16x1xf32, #tpu.memory_space<vmem>>) attributes {dimension_semantics = [#tpu.dimension_semantics<parallel>, #tpu.dimension_semantics<arbitrary>], iteration_bounds = array<i64: 1, 1>, scalar_prefetch = 0 : i64, scratch_operands = 2 : i64, tpu.core_type = #tpu.core_type<tc>, window_params = [{transform_indices = @transform_0, window_bounds = array<i64: 16, 8>}, {pipeline_mode = #tpu.pipeline_mode<synchronous>, transform_indices = @transform_1, window_bounds = array<i64: 1, 8, 128>}, {pipeline_mode = #tpu.pipeline_mode<synchronous>, transform_indices = @transform_2, window_bounds = array<i64: 1, 1, 128>}, {transform_indices = @transform_3, window_bounds = array<i64: 16, 1>}, {transform_indices = @transform_4, window_bounds = array<i64: 1, 1, 128>}]} {
    %c0 = arith.constant 0 : index
    %c0_0 = arith.constant 0 : index
    %0 = vector.load %arg2[%c0, %c0_0] : memref<16x8xf32, #tpu.memory_space<vmem>>, vector<16x8xf32>
    %1 = arith.index_cast %arg1 : i32 to index
    %c0_1 = arith.constant 0 : index
    %c0_2 = arith.constant 0 : index
    %2 = vector.load %arg3[%1, %c0_1, %c0_2] : memref<1x8x128xf32, #tpu.memory_space<vmem>>, vector<1x8x128xf32>
    %3 = vector.shape_cast %2 : vector<1x8x128xf32> to vector<8x128xf32>
    %4 = arith.index_cast %arg1 : i32 to index
    %c0_3 = arith.constant 0 : index
    %c0_4 = arith.constant 0 : index
    %5 = vector.load %arg4[%4, %c0_3, %c0_4] : memref<1x1x128xf32, #tpu.memory_space<vmem>>, vector<1x1x128xf32>
    %6 = vector.shape_cast %5 : vector<1x1x128xf32> to vector<1x128xf32>
    %cst = arith.constant dense<0.000000e+00> : vector<16x128xf32>
    %7 = tpu.matmul %0, %3, %cst {dimension_numbers = #tpu.dot_dimension_numbers<[1], [0], [0], [1], [0, 0, 1, 1], [], []>, precision = #tpu.contract_precision<fp32>} : vector<16x8xf32>, vector<8x128xf32>, vector<16x128xf32> -> vector<16x128xf32>
    %c0_i32 = arith.constant 0 : i32
    %8 = arith.cmpi eq, %arg1, %c0_i32 : i32
    %9 = arith.extui %8 : i1 to i32
    %c0_i32_5 = arith.constant 0 : i32
    %10 = arith.cmpi ne, %9, %c0_i32_5 : i32
    scf.if %10 {
      %cst_25 = arith.constant 1.000000e+30 : f32
      %37 = vector.broadcast %cst_25 : f32 to vector<16x1xf32>
      %c0_26 = arith.constant 0 : index
      %c0_27 = arith.constant 0 : index
      %38 = vector.load %arg7[%c0_26, %c0_27] : memref<16x1xf32, #tpu.memory_space<vmem>>, vector<16x1xf32>
      tpu.vector_store %arg7[%c0_26, %c0_27], %37 {strides = array<i32>} : memref<16x1xf32, #tpu.memory_space<vmem>>, vector<16x1xf32>,
      %cst_28 = arith.constant 0.000000e+00 : f32
      %39 = vector.broadcast %cst_28 : f32 to vector<16x1xf32>
      %c0_29 = arith.constant 0 : index
      %c0_30 = arith.constant 0 : index
      %40 = vector.load %arg8[%c0_29, %c0_30] : memref<16x1xf32, #tpu.memory_space<vmem>>, vector<16x1xf32>
      tpu.vector_store %arg8[%c0_29, %c0_30], %39 {strides = array<i32>} : memref<16x1xf32, #tpu.memory_space<vmem>>, vector<16x1xf32>,
    } else {
    }
    %cst_6 = arith.constant dense<0x7F800000> : vector<16xf32>
    %11 = vector.multi_reduction <minimumf>, %7, %cst_6 [1] : vector<16x128xf32> to vector<16xf32>
    %12 = vector.shape_cast %11 : vector<16xf32> to vector<16x1xf32>
    %13 = vector.broadcast %12 : vector<16x1xf32> to vector<16x128xf32>
    %14 = arith.cmpf oeq, %7, %13 : vector<16x128xf32>
    %cst_7 = arith.constant 0.000000e+00 : f32
    %15 = vector.shape_cast %6 : vector<1x128xf32> to vector<1x128xf32>
    %16 = vector.broadcast %15 : vector<1x128xf32> to vector<16x128xf32>
    %17 = vector.broadcast %cst_7 : f32 to vector<16x128xf32>
    %18 = arith.select %14, %16, %17 : vector<16x128xi1>, vector<16x128xf32>
    %cst_8 = arith.constant dense<0.000000e+00> : vector<16xf32>
    %19 = vector.multi_reduction <add>, %18, %cst_8 [1] : vector<16x128xf32> to vector<16xf32>
    %20 = vector.shape_cast %19 : vector<16xf32> to vector<16x1xf32>
    %c0_9 = arith.constant 0 : index
    %c0_10 = arith.constant 0 : index
    %21 = vector.load %arg7[%c0_9, %c0_10] : memref<16x1xf32, #tpu.memory_space<vmem>>, vector<16x1xf32>
    %22 = arith.cmpf olt, %12, %21 : vector<16x1xf32>
    %c0_11 = arith.constant 0 : index
    %c0_12 = arith.constant 0 : index
    %23 = vector.load %arg8[%c0_11, %c0_12] : memref<16x1xf32, #tpu.memory_space<vmem>>, vector<16x1xf32>
    %24 = arith.select %22, %20, %23 : vector<16x1xi1>, vector<16x1xf32>
    %c0_13 = arith.constant 0 : index
    %c0_14 = arith.constant 0 : index
    %25 = vector.load %arg8[%c0_13, %c0_14] : memref<16x1xf32, #tpu.memory_space<vmem>>, vector<16x1xf32>
    tpu.vector_store %arg8[%c0_13, %c0_14], %24 {strides = array<i32>} : memref<16x1xf32, #tpu.memory_space<vmem>>, vector<16x1xf32>,
    %c0_15 = arith.constant 0 : index
    %c0_16 = arith.constant 0 : index
    %26 = vector.load %arg7[%c0_15, %c0_16] : memref<16x1xf32, #tpu.memory_space<vmem>>, vector<16x1xf32>
    %27 = arith.select %22, %12, %26 : vector<16x1xi1>, vector<16x1xf32>
    %c0_17 = arith.constant 0 : index
    %c0_18 = arith.constant 0 : index
    %28 = vector.load %arg7[%c0_17, %c0_18] : memref<16x1xf32, #tpu.memory_space<vmem>>, vector<16x1xf32>
    tpu.vector_store %arg7[%c0_17, %c0_18], %27 {strides = array<i32>} : memref<16x1xf32, #tpu.memory_space<vmem>>, vector<16x1xf32>,
    %c0_i32_19 = arith.constant 0 : i32
    %29 = arith.cmpi eq, %arg1, %c0_i32_19 : i32
    %30 = arith.extui %29 : i1 to i32
    %c0_i32_20 = arith.constant 0 : i32
    %31 = arith.cmpi ne, %30, %c0_i32_20 : i32
    scf.if %31 {
      %c0_25 = arith.constant 0 : index
      %c0_26 = arith.constant 0 : index
      %37 = vector.load %arg7[%c0_25, %c0_26] : memref<16x1xf32, #tpu.memory_space<vmem>>, vector<16x1xf32>
      %cst_27 = arith.constant 0.000000e+00 : f32
      %38 = vector.broadcast %cst_27 : f32 to vector<16x1xf32>
      %39 = arith.maximumf %37, %38 : vector<16x1xf32>
      %40 = math.sqrt %39 : vector<16x1xf32>
      %c0_28 = arith.constant 0 : index
      %c0_29 = arith.constant 0 : index
      %41 = vector.load %arg8[%c0_28, %c0_29] : memref<16x1xf32, #tpu.memory_space<vmem>>, vector<16x1xf32>
      %42 = arith.mulf %40, %41 : vector<16x1xf32>
      %c0_30 = arith.constant 0 : index
      %c0_31 = arith.constant 0 : index
      %43 = vector.load %arg5[%c0_30, %c0_31] : memref<16x1xf32, #tpu.memory_space<vmem>>, vector<16x1xf32>
      tpu.vector_store %arg5[%c0_30, %c0_31], %42 {strides = array<i32>} : memref<16x1xf32, #tpu.memory_space<vmem>>, vector<16x1xf32>,
    } else {
    }
    %cst_21 = arith.constant dense<0x7F800000> : vector<128xf32>
    %32 = vector.multi_reduction <minimumf>, %7, %cst_21 [0] : vector<16x128xf32> to vector<128xf32>
    %33 = vector.shape_cast %32 : vector<128xf32> to vector<1x128xf32>
    %c0_22 = arith.constant 0 : index
    %c0_23 = arith.constant 0 : index
    %c0_24 = arith.constant 0 : index
    %34 = vector.load %arg6[%c0_22, %c0_23, %c0_24] : memref<1x1x128xf32, #tpu.memory_space<vmem>>, vector<1x1x128xf32>
    %35 = vector.shape_cast %34 : vector<1x1x128xf32> to vector<1x128xf32>
    %36 = vector.shape_cast %33 : vector<1x128xf32> to vector<1x1x128xf32>
    tpu.vector_store %arg6[%c0_22, %c0_23, %c0_24], %36 {strides = array<i32>} : memref<1x1x128xf32, #tpu.memory_space<vmem>>, vector<1x1x128xf32>,
    return
  }
  func.func @transform_0(%arg0: i32, %arg1: i32) -> (i32, i32) {
    %c0_i32 = arith.constant 0 : i32
    %c0_i32_0 = arith.constant 0 : i32
    return %arg0, %c0_i32 : i32, i32
  }
  func.func @transform_1(%arg0: i32, %arg1: i32) -> (i32, i32, i32) {
    %c0_i32 = arith.constant 0 : i32
    %c0_i32_0 = arith.constant 0 : i32
    %c0_i32_1 = arith.constant 0 : i32
    %c0_i32_2 = arith.constant 0 : i32
    return %c0_i32, %c0_i32_0, %c0_i32_1 : i32, i32, i32
  }
  func.func @transform_2(%arg0: i32, %arg1: i32) -> (i32, i32, i32) {
    %c0_i32 = arith.constant 0 : i32
    %c0_i32_0 = arith.constant 0 : i32
    %c0_i32_1 = arith.constant 0 : i32
    %c0_i32_2 = arith.constant 0 : i32
    return %c0_i32, %c0_i32_0, %c0_i32_1 : i32, i32, i32
  }
  func.func @transform_3(%arg0: i32, %arg1: i32) -> (i32, i32) {
    %c0_i32 = arith.constant 0 : i32
    %c0_i32_0 = arith.constant 0 : i32
    return %arg0, %c0_i32 : i32, i32
  }
  func.func @transform_4(%arg0: i32, %arg1: i32) -> (i32, i32, i32) {
    %c0_i32 = arith.constant 0 : i32
    %c0_i32_0 = arith.constant 0 : i32
    return %arg0, %c0_i32, %arg1 : i32, i32, i32
  }
}

</mosaic_0001>

<llo_original>
// kernel: tpu_custom_call.1
$region0: #{tpu_custom_call.1}
  #allocation0 [shape = 'u32[]', space=smem, size = 0x4, offset = 0x4, fixed_abs, tag = 'smem constant byte address 0x4 - core index']
  #allocation1 [shape = 'u32[72,128]{1,0:T(1,128)}', space=vmem, size = 0x9000, scoped, tag = 'internal scratch']
  #allocation2 [shape = 'f32[16,1]{1,0:T(8,128)}', space=vmem, size = 0x2000, scoped, tag = 'scratch operand']
  #allocation3 [shape = 'f32[16,1]{1,0:T(8,128)}', space=vmem, size = 0x2000, scoped, tag = 'scratch operand']
  %s0 = inlined_call_operand.vmem [shape: f32[16,8], index: 0, kind: input, shape index: {}]
  %s1 = inlined_call_operand.vmem [shape: f32[1,8,128], index: 1, kind: input, shape index: {}]
  %s2 = inlined_call_operand.vmem [shape: f32[1,1,128], index: 2, kind: input, shape index: {}]
  %s3 = inlined_call_operand.vmem [shape: f32[16,1], index: 3, kind: output, shape index: {0}]
  %s4 = inlined_call_operand.hbm [shape: f32[1,1,128], index: 4, kind: output, shape index: {1}]
  %5 = xla_tuple %s3, %s4
  %s6 = sld [smem:[#allocation0]]
  $region38: #{tpu_custom_call.1} parent=0
    _
  %s8 = ssub.s32 1, %s6
  %s9 = scalar_select 0, %s8, %s6
  $region1: #{tpu_custom_call.1} parent=0
    #allocation4 [shape = 'u8[512]{0}', space=vmem, size = 0x400, scoped, tag = 'output window, operand 1, single buffered']
    #allocation5 [shape = 's32[1]{0}', space=sflag, size = 0x4, scoped, tag = 'scoped memory for tpu_custom_call.1']
    %10 = vsyncpa [#allocation5], 0
    // Predicated region
    $region2: #{tpu_custom_call.1} parent=1 // pred_check
      _
    $region3: #{tpu_custom_call.1} parent=1 // pred_check_branch
      %12 = sbr.rel (0) target = $region5
    $region4: #{tpu_custom_call.1} parent=1 // pred_region
      _
    $region5: #{tpu_custom_call.1} parent=1 // pred_fallthru
      _
    // Predicated region
    $region6: #{tpu_custom_call.1} parent=1 // pred_check
      _
    $region7: #{tpu_custom_call.1} parent=1 // pred_check_branch
      %14 = sbr.rel (0) target = $region9
    $region8: #{tpu_custom_call.1} parent=1 // pred_region
      _
    $region9: #{tpu_custom_call.1} parent=1 // pred_fallthru
      _
    // Predicated region
    $region10: #{tpu_custom_call.1} parent=1 // pred_check
      _
    $region11: #{tpu_custom_call.1} parent=1 // pred_check_branch
      %16 = sbr.rel (0) target = $region13
    $region12: #{tpu_custom_call.1} parent=1 // pred_region
      _
    $region13: #{tpu_custom_call.1} parent=1 // pred_fallthru
      _
    %v17 = vld [vmem:[%s0] sm:$0xff]
    %v18 = vld [vmem:[%s0 + $0x8] sm:$0xff]
    %s19 = smul.u32 0, 8
    %s20 = scalar_lea.vmem %s1, %s19
    %v21 = vld [vmem:[%s20] sm:$0xff]
    %v22 = vld [vmem:[%s2] sm:$0x1]
    %vm23 = vcmask 64512
    %v25 = vsel %vm23, %v17, 0
    %v28 = vsel %vm23, %v18, 0
    %30 = vmatpush.msra.mxu0 0.0
    %31 = vmatpush.msra.mxu0 0.0
    %32 = vmatpush.msra.mxu0 0.0
    %33 = vmatpush.msra.mxu0 0.0
    %34 = vmatpush.msra.mxu0 0.0
    %35 = vmatpush.msra.mxu0 0.0
    %36 = vmatpush.msra.mxu0 0.0
    %37 = vmatpush.msra.mxu0 0.0
    %38 = vmatpush.msra.mxu0 0.0
    %39 = vmatpush.msra.mxu0 0.0
    %40 = vmatpush.msra.mxu0 0.0
    %41 = vmatpush.msra.mxu0 0.0
    %42 = vmatpush.msra.mxu0 0.0
    %43 = vmatpush.msra.mxu0 0.0
    %44 = vmatpush.msra.mxu0 0.0
    %v45 = vand.u32 %v21, 4294901760
    %46 = vmatpush.msra.mxu0 %v45
    %v47 = vand.u32 %v25, 4294901760
    %v48 = vsub.f32 %v25, %v47
    %v49 = vand.u32 %v48, 4294901760
    %v50 = vsub.f32 %v48, %v49
    %v51 = vand.u32 %v50, 4294901760
    %52 = vmatmul.f32.gmra.mxu0 %v51
    %v53 = vpop.f32.mrf.mxu0
    %v54 = vadd.f32 0.0, %v53
    %v55 = vand.u32 %v28, 4294901760
    %v56 = vsub.f32 %v28, %v55
    %v57 = vand.u32 %v56, 4294901760
    %v58 = vsub.f32 %v56, %v57
    %v59 = vand.u32 %v58, 4294901760
    %60 = vmatmul.f32.gmra.mxu0 %v59
    %v61 = vpop.f32.mrf.mxu0
    %v62 = vadd.f32 0.0, %v61
    %63 = vdwg.mxu0
    %64 = vmatpush.msra.mxu0 0.0
    %65 = vmatpush.msra.mxu0 0.0
    %66 = vmatpush.msra.mxu0 0.0
    %67 = vmatpush.msra.mxu0 0.0
    %68 = vmatpush.msra.mxu0 0.0
    %69 = vmatpush.msra.mxu0 0.0
    %70 = vmatpush.msra.mxu0 0.0
    %71 = vmatpush.msra.mxu0 0.0
    %72 = vmatpush.msra.mxu0 0.0
    %73 = vmatpush.msra.mxu0 0.0
    %74 = vmatpush.msra.mxu0 0.0
    %75 = vmatpush.msra.mxu0 0.0
    %76 = vmatpush.msra.mxu0 0.0
    %77 = vmatpush.msra.mxu0 0.0
    %78 = vmatpush.msra.mxu0 0.0
    %v79 = vand.u32 %v21, 4294901760
    %v80 = vsub.f32 %v21, %v79
    %v81 = vand.u32 %v80, 4294901760
    %v82 = vsub.f32 %v80, %v81
    %v83 = vand.u32 %v82, 4294901760
    %84 = vmatpush.msra.mxu0 %v83
    %v85 = vand.u32 %v25, 4294901760
    %86 = vmatmul.f32.gmra.mxu0 %v85
    %v87 = vpop.f32.mrf.mxu0
    %v88 = vadd.f32 %v54, %v87
    %v89 = vand.u32 %v28, 4294901760
    %90 = vmatmul.f32.gmra.mxu0 %v89
    %v91 = vpop.f32.mrf.mxu0
    %v92 = vadd.f32 %v62, %v91
    %93 = vdwg.mxu0
    %94 = vmatpush.msra.mxu0 0.0
    %95 = vmatpush.msra.mxu0 0.0
    %96 = vmatpush.msra.mxu0 0.0
    %97 = vmatpush.msra.mxu0 0.0
    %98 = vmatpush.msra.mxu0 0.0
    %99 = vmatpush.msra.mxu0 0.0
    %100 = vmatpush.msra.mxu0 0.0
    %101 = vmatpush.msra.mxu0 0.0
    %102 = vmatpush.msra.mxu0 0.0
    %103 = vmatpush.msra.mxu0 0.0
    %104 = vmatpush.msra.mxu0 0.0
    %105 = vmatpush.msra.mxu0 0.0
    %106 = vmatpush.msra.mxu0 0.0
    %107 = vmatpush.msra.mxu0 0.0
    %108 = vmatpush.msra.mxu0 0.0
    %v109 = vand.u32 %v21, 4294901760
    %v110 = vsub.f32 %v21, %v109
    %111 = vmatpush.msra.mxu0 %v110
    %v112 = vand.u32 %v25, 4294901760
    %v113 = vsub.f32 %v25, %v112
    %114 = vmatmul.f32.gmra.mxu0 %v113
    %v115 = vpop.f32.mrf.mxu0
    %v116 = vadd.f32 %v88, %v115
    %v117 = vand.u32 %v28, 4294901760
    %v118 = vsub.f32 %v28, %v117
    %119 = vmatmul.f32.gmra.mxu0 %v118
    %v120 = vpop.f32.mrf.mxu0
    %v121 = vadd.f32 %v92, %v120
    %122 = vdwg.mxu0
    %123 = vmatpush.msra.mxu0 0.0
    %124 = vmatpush.msra.mxu0 0.0
    %125 = vmatpush.msra.mxu0 0.0
    %126 = vmatpush.msra.mxu0 0.0
    %127 = vmatpush.msra.mxu0 0.0
    %128 = vmatpush.msra.mxu0 0.0
    %129 = vmatpush.msra.mxu0 0.0
    %130 = vmatpush.msra.mxu0 0.0
    %131 = vmatpush.msra.mxu0 0.0
    %132 = vmatpush.msra.mxu0 0.0
    %133 = vmatpush.msra.mxu0 0.0
    %134 = vmatpush.msra.mxu0 0.0
    %135 = vmatpush.msra.mxu0 0.0
    %136 = vmatpush.msra.mxu0 0.0
    %137 = vmatpush.msra.mxu0 0.0
    %v138 = vand.u32 %v21, 4294901760
    %139 = vmatpush.msra.mxu0 %v138
    %v140 = vand.u32 %v25, 4294901760
    %v141 = vsub.f32 %v25, %v140
    %v142 = vand.u32 %v141, 4294901760
    %143 = vmatmul.f32.gmra.mxu0 %v142
    %v144 = vpop.f32.mrf.mxu0
    %v145 = vadd.f32 %v116, %v144
    %v146 = vand.u32 %v28, 4294901760
    %v147 = vsub.f32 %v28, %v146
    %v148 = vand.u32 %v147, 4294901760
    %149 = vmatmul.f32.gmra.mxu0 %v148
    %v150 = vpop.f32.mrf.mxu0
    %v151 = vadd.f32 %v121, %v150
    %152 = vdwg.mxu0
    %153 = vmatpush.msra.mxu0 0.0
    %154 = vmatpush.msra.mxu0 0.0
    %155 = vmatpush.msra.mxu0 0.0
    %156 = vmatpush.msra.mxu0 0.0
    %157 = vmatpush.msra.mxu0 0.0
    %158 = vmatpush.msra.mxu0 0.0
    %159 = vmatpush.msra.mxu0 0.0
    %160 = vmatpush.msra.mxu0 0.0
    %161 = vmatpush.msra.mxu0 0.0
    %162 = vmatpush.msra.mxu0 0.0
    %163 = vmatpush.msra.mxu0 0.0
    %164 = vmatpush.msra.mxu0 0.0
    %165 = vmatpush.msra.mxu0 0.0
    %166 = vmatpush.msra.mxu0 0.0
    %167 = vmatpush.msra.mxu0 0.0
    %v168 = vand.u32 %v21, 4294901760
    %v169 = vsub.f32 %v21, %v168
    %v170 = vand.u32 %v169, 4294901760
    %171 = vmatpush.msra.mxu0 %v170
    %v172 = vand.u32 %v25, 4294901760
    %173 = vmatmul.f32.gmra.mxu0 %v172
    %v174 = vpop.f32.mrf.mxu0
    %v175 = vadd.f32 %v145, %v174
    %v176 = vand.u32 %v28, 4294901760
    %177 = vmatmul.f32.gmra.mxu0 %v176
    %v178 = vpop.f32.mrf.mxu0
    %v179 = vadd.f32 %v151, %v178
    %180 = vdwg.mxu0
    %181 = vmatpush.msra.mxu0 0.0
    %182 = vmatpush.msra.mxu0 0.0
    %183 = vmatpush.msra.mxu0 0.0
    %184 = vmatpush.msra.mxu0 0.0
    %185 = vmatpush.msra.mxu0 0.0
    %186 = vmatpush.msra.mxu0 0.0
    %187 = vmatpush.msra.mxu0 0.0
    %188 = vmatpush.msra.mxu0 0.0
    %189 = vmatpush.msra.mxu0 0.0
    %190 = vmatpush.msra.mxu0 0.0
    %191 = vmatpush.msra.mxu0 0.0
    %192 = vmatpush.msra.mxu0 0.0
    %193 = vmatpush.msra.mxu0 0.0
    %194 = vmatpush.msra.mxu0 0.0
    %195 = vmatpush.msra.mxu0 0.0
    %v196 = vand.u32 %v21, 4294901760
    %197 = vmatpush.msra.mxu0 %v196
    %v198 = vand.u32 %v25, 4294901760
    %199 = vmatmul.f32.gmra.mxu0 %v198
    %v200 = vpop.f32.mrf.mxu0
    %v201 = vadd.f32 %v175, %v200
    %v202 = vand.u32 %v28, 4294901760
    %203 = vmatmul.f32.gmra.mxu0 %v202
    %v204 = vpop.f32.mrf.mxu0
    %v205 = vadd.f32 %v179, %v204
    %206 = vdwg.mxu0
    %p207 = scmp.eq.s32.totalorder 0, 0
    // Predicated region
    $region14: #{tpu_custom_call.1} parent=1 // pred_check
      %p208 = pneg %p207
    $region15: #{tpu_custom_call.1} parent=1 // pred_check_branch
      %210 = sbr.rel (%p208) target = $region17
    $region16: #{tpu_custom_call.1} parent=1 // pred_region
      %vm211 = vcmask 7168
      %212 = vst.msk [vmem:[#allocation2] sm:$0xff] %vm211, 1e+30
      %213 = vst.msk [vmem:[#allocation2 + $0x8] sm:$0xff] %vm211, 1e+30
      %214 = vst.msk [vmem:[#allocation3] sm:$0xff] %vm211, 0.0
      %215 = vst.msk [vmem:[#allocation3 + $0x8] sm:$0xff] %vm211, 0.0
    $region17: #{tpu_custom_call.1} parent=1 // pred_fallthru
      _
    %216 = vmin.xlane.f32.xlu0 %v201
    %v217 = vpop.xlane.xlu0 %216
    %218 = vmin.xlane.f32.xlu0 %v205
    %v219 = vpop.xlane.xlu0 %218
    %vm220 = vcmp.eq.f32.partialorder %v201, %v217
    %vm221 = vcmp.eq.f32.partialorder %v205, %v219
    %v223 = vperm.slane %v22, 0
    %v225 = vsel %vm220, %v223, 0.0
    %v226 = vsel %vm221, %v223, 0.0
    %227 = vadd.xlane.f32.xlu0 %v225
    %v228 = vpop.xlane.xlu0 %227
    %229 = vadd.xlane.f32.xlu0 %v226
    %v230 = vpop.xlane.xlu0 %229
    %v231 = vld [vmem:[#allocation2] sm:$0xff]
    %v232 = vld [vmem:[#allocation2 + $0x8] sm:$0xff]
    %vm233 = vcmp.lt.f32.partialorder %v217, %v231
    %vm234 = vcmp.lt.f32.partialorder %v219, %v232
    %v235 = vld [vmem:[#allocation3] sm:$0xff]
    %v236 = vld [vmem:[#allocation3 + $0x8] sm:$0xff]
    %v237 = vsel %vm233, %v228, %v235
    %v238 = vsel %vm234, %v230, %v236
    %vm239 = vcmask 7168
    %240 = vst.msk [vmem:[#allocation3] sm:$0xff] %vm239, %v237
    %241 = vst.msk [vmem:[#allocation3 + $0x8] sm:$0xff] %vm239, %v238
    %v242 = vld [vmem:[#allocation2] sm:$0xff]
    %v243 = vld [vmem:[#allocation2 + $0x8] sm:$0xff]
    %v244 = vsel %vm233, %v217, %v242
    %v245 = vsel %vm234, %v219, %v243
    %246 = vst.msk [vmem:[#allocation2] sm:$0xff] %vm239, %v244
    %247 = vst.msk [vmem:[#allocation2 + $0x8] sm:$0xff] %vm239, %v245
    // Predicated region
    $region18: #{tpu_custom_call.1} parent=1 // pred_check
      %p248 = pneg %p207
    $region19: #{tpu_custom_call.1} parent=1 // pred_check_branch
      %250 = sbr.rel (%p248) target = $region21
    $region20: #{tpu_custom_call.1} parent=1 // pred_region
      %v251 = vld [vmem:[#allocation2] sm:$0xff]
      %v252 = vld [vmem:[#allocation2 + $0x8] sm:$0xff]
      %v253 = vmax.f32 %v251, 0.0
      %v254 = vmax.f32 %v252, 0.0
      %v255 = vrsqrt.pop %v253
      %v256 = vmul.f32 %v255, %v253
      %v257 = vmul.f32 %v256, %v255
      %v258 = vmul.f32 0.5, %v257
      %v259 = vsub.f32 1.5, %v258
      %v260 = vmul.f32 %v255, %v259
      %v261 = vmul.f32 %v253, %v260
      %vm262 = vcmp.eq.f32.partialorder %v253, inf
      %v263 = vsel %vm262, %v253, %v261
      %vm264 = vcmp.eq.f32.partialorder %v253, 0.0
      %v265 = vand.u32 %v253, 2147483648
      %v266 = vsel %vm264, %v265, %v263
      %v267 = vrsqrt.pop %v254
      %v268 = vmul.f32 %v267, %v254
      %v269 = vmul.f32 %v268, %v267
      %v270 = vmul.f32 0.5, %v269
      %v271 = vsub.f32 1.5, %v270
      %v272 = vmul.f32 %v267, %v271
      %v273 = vmul.f32 %v254, %v272
      %vm274 = vcmp.eq.f32.partialorder %v254, inf
      %v275 = vsel %vm274, %v254, %v273
      %vm276 = vcmp.eq.f32.partialorder %v254, 0.0
      %v277 = vand.u32 %v254, 2147483648
      %v278 = vsel %vm276, %v277, %v275
      %v279 = vld [vmem:[#allocation3] sm:$0xff]
      %v280 = vld [vmem:[#allocation3 + $0x8] sm:$0xff]
      %v281 = vmul.f32 %v266, %v279
      %v282 = vmul.f32 %v278, %v280
      %283 = vst.msk [vmem:[%s3] sm:$0xff] %vm239, %v281
      %284 = vst.msk [vmem:[%s3 + $0x8] sm:$0xff] %vm239, %v282
    $region21: #{tpu_custom_call.1} parent=1 // pred_fallthru
      _
    %v285 = vmin.f32 %v201, %v205
    %v286 = vrot.slane %v285, 4
    %v287 = vmin.f32 %v285, %v286
    %v288 = vrot.slane %v287, 2
    %v289 = vmin.f32 %v287, %v288
    %v290 = vrot.slane %v289, 1
    %v291 = vmin.f32 %v289, %v290
    %292 = vst [vmem:[#allocation4] sm:$0x1] %v291
    // Predicated region
    $region22: #{tpu_custom_call.1} parent=1 // pred_check
      _
    $region23: #{tpu_custom_call.1} parent=1 // pred_check_branch
      %294 = sbr.rel (0) target = $region25
    $region24: #{tpu_custom_call.1} parent=1 // pred_region
      _
    $region25: #{tpu_custom_call.1} parent=1 // pred_fallthru
      _
    // Predicated region
    $region26: #{tpu_custom_call.1} parent=1 // pred_check
      _
    $region27: #{tpu_custom_call.1} parent=1 // pred_check_branch
      %296 = sbr.rel (0) target = $region29
    $region28: #{tpu_custom_call.1} parent=1 // pred_region
      %298 = vsyncadd [#allocation5], 0
      %s300 = sshll.u32 [#allocation4], 4
      %s301 = int_to_ptr.vmem [resolvable:$true] %s300
      %s302 = sshll.u32 %s4, 4
      %s303 = int_to_ptr.hbm [resolvable:$true] %s302
      %305 = dma.vmem_to_hbm [thread:$0]  %s301, 16, %s303, [#allocation5]
    $region29: #{tpu_custom_call.1} parent=1 // pred_fallthru
      _
    // Predicated region
    $region30: #{tpu_custom_call.1} parent=1 // pred_check
      _
    $region31: #{tpu_custom_call.1} parent=1 // pred_check_branch
      %307 = sbr.rel (0) target = $region33
    $region32: #{tpu_custom_call.1} parent=1 // pred_region
      _
    $region33: #{tpu_custom_call.1} parent=1 // pred_fallthru
      _
    // Predicated region
    $region34: #{tpu_custom_call.1} parent=1 // pred_check
      _
    $region35: #{tpu_custom_call.1} parent=1 // pred_check_branch
      %309 = sbr.rel (0) target = $region37
    $region36: #{tpu_custom_call.1} parent=1 // pred_region
      %311 = dma.done [#allocation5], 16
    $region37: #{tpu_custom_call.1} parent=1 // pred_fallthru
      _
    %312 = vsyncpa [#allocation5], 1

</llo_original>
